<compile_context>
chip_gen: v5e
topology: v5e:2x2
jax: 0.10.0
libtpu: 0.0.40
codegen_flags: <defaults>
</compile_context>

<pallas_src>
import functools

import jax
import jax.numpy as jnp
from jax import lax
from jax.experimental import pallas as pl
from jax.experimental.pallas import tpu as pltpu


# ----------------------------- kernel -------------------------------------

def _embedding_kernel(ids_ref, pos_ref, wte_hbm, wpe_hbm, o_ref,
                      te_buf, pe_buf, sem, *, tb):
    """Gather TB rows of wte and wpe via async row DMAs, add, store dense tile.

    ids_ref / pos_ref : SMEM scalar-prefetch refs, shape (N_padded,)
    wte_hbm / wpe_hbm : HBM refs (V, D) / (P, D)
    o_ref             : (tb, D) VMEM output block
    te_buf / pe_buf   : (tb, D) VMEM gather scratch
    sem               : DMA semaphores, shape (2,)
    """
    i = pl.program_id(0)
    base = i * tb

    # Issue all 2*tb row-gather DMAs for this token block (all in flight
    # concurrently; each copy signals the shared per-table semaphore).
    def issue(k, carry):
        tok = ids_ref[base + k]
        p = pos_ref[base + k]
        pltpu.make_async_copy(
            wte_hbm.at[pl.ds(tok, 1), :], te_buf.at[pl.ds(k, 1), :], sem.at[0]
        ).start()
        pltpu.make_async_copy(
            wpe_hbm.at[pl.ds(p, 1), :], pe_buf.at[pl.ds(k, 1), :], sem.at[1]
        ).start()
        return carry

    lax.fori_loop(0, tb, issue, 0)

    # Wait for every issued row copy (one matching-sized wait per started DMA).
    def wait(k, carry):
        pltpu.make_async_copy(
            wte_hbm.at[pl.ds(0, 1), :], te_buf.at[pl.ds(0, 1), :], sem.at[0]
        ).wait()
        pltpu.make_async_copy(
            wpe_hbm.at[pl.ds(0, 1), :], pe_buf.at[pl.ds(0, 1), :], sem.at[1]
        ).wait()
        return carry

    lax.fori_loop(0, tb, wait, 0)

    # Dense (tb, D) add + store (full-vreg, lane-dense output block).
    o_ref[...] = (te_buf[...] + pe_buf[...]).astype(o_ref.dtype)


# ----------------------------- wrapper -------------------------------------

def embedding_forward(input_ids, wte, wpe, position_ids=None, past_length=0,
                      block_tokens=128):
    """input_ids: (B, T) int; wte: (V, D); wpe: (P, D) -> (B, T, D)."""
    B, T = input_ids.shape
    V, D = wte.shape
    P, _ = wpe.shape
    N = B * T

    out_dtype = jnp.promote_types(wte.dtype, wpe.dtype)

    if position_ids is None:
        # past_length offsets the arange (past_key_values case); broadcast over batch.
        position_ids = jnp.broadcast_to(
            (past_length + jnp.arange(T, dtype=jnp.int32))[None, :], (B, T))

    # Clamp ids so an out-of-range id cannot become an out-of-bounds row DMA.
    ids_flat = jnp.clip(input_ids.reshape(N).astype(jnp.int32), 0, V - 1)
    pos_flat = jnp.clip(position_ids.reshape(N).astype(jnp.int32), 0, P - 1)

    # Token block size: multiple of 8 (f32 sublane packing), capped at block_tokens.
    assert block_tokens % 8 == 0
    tb = max(8, min(block_tokens, ((N + 7) // 8) * 8))
    n_padded = pl.cdiv(N, tb) * tb
    pad = n_padded - N
    if pad:
        ids_flat = jnp.pad(ids_flat, (0, pad))   # pad with row 0 (in-bounds)
        pos_flat = jnp.pad(pos_flat, (0, pad))

    kernel = functools.partial(_embedding_kernel, tb=tb)

    out = pl.pallas_call(
        kernel,
        out_shape=jax.ShapeDtypeStruct((n_padded, D), out_dtype),
        grid_spec=pltpu.PrefetchScalarGridSpec(
            num_scalar_prefetch=2,                 # ids_flat, pos_flat -> SMEM
            grid=(n_padded // tb,),                # one block of tb tokens per step
            in_specs=[
                pl.BlockSpec(memory_space=pl.ANY),   # wte stays in HBM (manual gather)
                pl.BlockSpec(memory_space=pl.ANY),   # wpe stays in HBM (manual gather)
            ],
            out_specs=pl.BlockSpec((tb, D), lambda i, ids, pos: (i, 0)),
            scratch_shapes=[
                pltpu.VMEM((tb, D), wte.dtype),      # gathered token rows
                pltpu.VMEM((tb, D), wpe.dtype),      # gathered position rows
                pltpu.SemaphoreType.DMA((2,)),       # one sem per table
            ],
        ),
        compiler_params=pltpu.CompilerParams(
            dimension_semantics=("parallel",)),      # blocks independent -> v7x 2 TCs
    )(ids_flat, pos_flat, wte, wpe)

    if pad:
        out = out[:N]
    return out.reshape(B, T, D)


# TODO(synk): token_type_ids (extra wte gather+add) and inputs_embeds branches
# of the PyTorch forward are plain glue and not implemented here; only the
# main input_ids path (with optional position_ids / past_length) is covered.


# ----------------------------- demo ----------------------------------------

if __name__ == "__main__":
    # Small synthetic config (ModelConfig): vocab_size=128, n_positions=64, n_embd=128
    VOCAB, N_POS, N_EMBD = 128, 64, 128
    B, T = 2, 8

    key = jax.random.PRNGKey(0)
    k_wte, k_wpe, k_ids = jax.random.split(key, 3)

    # Deterministic parameter init (N(0, 0.02), GPT-2 style)
    wte = 0.02 * jax.random.normal(k_wte, (VOCAB, N_EMBD), dtype=jnp.float32)
    wpe = 0.02 * jax.random.normal(k_wpe, (N_POS, N_EMBD), dtype=jnp.float32)

    input_ids = jax.random.randint(k_ids, (B, T), 0, VOCAB, dtype=jnp.int32)

    out = embedding_forward(input_ids, wte, wpe)
    out = jax.block_until_ready(out)

    # Reference check in plain JAX
    pos = jnp.broadcast_to(jnp.arange(T, dtype=jnp.int32)[None, :], (B, T))
    ref = jnp.take(wte, input_ids, axis=0) + jnp.take(wpe, pos, axis=0)

    assert out.shape == (B, T, N_EMBD)
    assert jnp.allclose(out, ref, atol=1e-6, rtol=1e-6)

    print("KERNEL_OK")
</pallas_src>

<mosaic_0001>
module attributes {stable_mosaic.version = 11 : i64} {
  func.func @_embedding_kernel(%arg0: i32, %arg1: memref<16xi32, #tpu.memory_space<smem>>, %arg2: memref<16xi32, #tpu.memory_space<smem>>, %arg3: memref<128x128xf32, #tpu.memory_space<any>>, %arg4: memref<64x128xf32, #tpu.memory_space<any>>, %arg5: memref<16x128xf32, #tpu.memory_space<vmem>>, %arg6: memref<16x128xf32, #tpu.memory_space<vmem>>, %arg7: memref<16x128xf32, #tpu.memory_space<vmem>>, %arg8: memref<2x!tpu.dma_semaphore, #tpu.memory_space<semaphore_mem>>) attributes {dimension_semantics = [#tpu.dimension_semantics<parallel>], iteration_bounds = array<i64: 1>, scalar_prefetch = 2 : i64, scratch_operands = 3 : i64, tpu.core_type = #tpu.core_type<tc>, window_params = [{}, {}, {transform_indices = @transform_2, window_bounds = array<i64: 16, 128>}]} {
    %c16_i32 = arith.constant 16 : i32
    %0 = arith.muli %arg0, %c16_i32 : i32
    %c0_i32 = arith.constant 0 : i32
    %c16_i32_0 = arith.constant 16 : i32
    %1 = arith.addi %c0_i32, %c16_i32_0 : i32
    %c1_i32 = arith.constant 1 : i32
    scf.for %arg9 = %c0_i32 to %1 step %c1_i32  : i32 {
      %7 = arith.addi %0, %arg9 : i32
      %8 = arith.index_cast %7 : i32 to index
      %9 = memref.load %arg1[%8] : memref<16xi32, #tpu.memory_space<smem>>
      %10 = arith.addi %0, %arg9 : i32
      %11 = arith.index_cast %10 : i32 to index
      %12 = memref.load %arg2[%11] : memref<16xi32, #tpu.memory_space<smem>>
      %c0_i32_10 = arith.constant 0 : i32
      %c0_i32_11 = arith.constant 0 : i32
      %13 = tpu.memref_slice %arg3[%9, %c0_i32_11] : memref<128x128xf32, #tpu.memory_space<any>> -> memref<1x128xf32, #tpu.memory_space<any>>
      %c0_i32_12 = arith.constant 0 : i32
      %14 = tpu.memref_slice %arg6[%arg9, %c0_i32_12] : memref<16x128xf32, #tpu.memory_space<vmem>> -> memref<1x128xf32, #tpu.memory_space<vmem>>
      %15 = tpu.memref_slice %arg8[%c0_i32_10] : memref<2x!tpu.dma_semaphore, #tpu.memory_space<semaphore_mem>> -> memref<1x!tpu.dma_semaphore, #tpu.memory_space<semaphore_mem>>
      %16 = tpu.memref_squeeze %15 : memref<1x!tpu.dma_semaphore, #tpu.memory_space<semaphore_mem>> -> memref<!tpu.dma_semaphore, #tpu.memory_space<semaphore_mem>>
      tpu.enqueue_dma source(%13 : memref<1x128xf32, #tpu.memory_space<any>>) target(%14 : memref<1x128xf32, #tpu.memory_space<vmem>>) target_semaphore(%16 : memref<!tpu.dma_semaphore, #tpu.memory_space<semaphore_mem>>)
      %c1_i32_13 = arith.constant 1 : i32
      %c0_i32_14 = arith.constant 0 : i32
      %17 = tpu.memref_slice %arg4[%12, %c0_i32_14] : memref<64x128xf32, #tpu.memory_space<any>> -> memref<1x128xf32, #tpu.memory_space<any>>
      %c0_i32_15 = arith.constant 0 : i32
      %18 = tpu.memref_slice %arg7[%arg9, %c0_i32_15] : memref<16x128xf32, #tpu.memory_space<vmem>> -> memref<1x128xf32, #tpu.memory_space<vmem>>
      %19 = tpu.memref_slice %arg8[%c1_i32_13] : memref<2x!tpu.dma_semaphore, #tpu.memory_space<semaphore_mem>> -> memref<1x!tpu.dma_semaphore, #tpu.memory_space<semaphore_mem>>
      %20 = tpu.memref_squeeze %19 : memref<1x!tpu.dma_semaphore, #tpu.memory_space<semaphore_mem>> -> memref<!tpu.dma_semaphore, #tpu.memory_space<semaphore_mem>>
      tpu.enqueue_dma source(%17 : memref<1x128xf32, #tpu.memory_space<any>>) target(%18 : memref<1x128xf32, #tpu.memory_space<vmem>>) target_semaphore(%20 : memref<!tpu.dma_semaphore, #tpu.memory_space<semaphore_mem>>)
    }
    %c16_i32_1 = arith.constant 16 : i32
    %c0_i32_2 = arith.constant 0 : i32
    %c16_i32_3 = arith.constant 16 : i32
    %2 = arith.addi %c0_i32_2, %c16_i32_3 : i32
    %c1_i32_4 = arith.constant 1 : i32
    scf.for %arg9 = %c0_i32_2 to %2 step %c1_i32_4  : i32 {
      %c0_i32_10 = arith.constant 0 : i32
      %c0_i32_11 = arith.constant 0 : i32
      %c0_i32_12 = arith.constant 0 : i32
      %7 = tpu.memref_slice %arg3[%c0_i32_11, %c0_i32_12] : memref<128x128xf32, #tpu.memory_space<any>> -> memref<1x128xf32, #tpu.memory_space<any>>
      %c0_i32_13 = arith.constant 0 : i32
      %c0_i32_14 = arith.constant 0 : i32
      %8 = tpu.memref_slice %arg6[%c0_i32_13, %c0_i32_14] : memref<16x128xf32, #tpu.memory_space<vmem>> -> memref<1x128xf32, #tpu.memory_space<vmem>>
      %9 = tpu.memref_slice %arg8[%c0_i32_10] : memref<2x!tpu.dma_semaphore, #tpu.memory_space<semaphore_mem>> -> memref<1x!tpu.dma_semaphore, #tpu.memory_space<semaphore_mem>>
      %10 = tpu.memref_squeeze %9 : memref<1x!tpu.dma_semaphore, #tpu.memory_space<semaphore_mem>> -> memref<!tpu.dma_semaphore, #tpu.memory_space<semaphore_mem>>
      tpu.wait_dma2 semaphore(%10 : memref<!tpu.dma_semaphore, #tpu.memory_space<semaphore_mem>>) src(%7 : memref<1x128xf32, #tpu.memory_space<any>>) dst(%8 : memref<1x128xf32, #tpu.memory_space<vmem>>)
      %c1_i32_15 = arith.constant 1 : i32
      %c0_i32_16 = arith.constant 0 : i32
      %c0_i32_17 = arith.constant 0 : i32
      %11 = tpu.memref_slice %arg4[%c0_i32_16, %c0_i32_17] : memref<64x128xf32, #tpu.memory_space<any>> -> memref<1x128xf32, #tpu.memory_space<any>>
      %c0_i32_18 = arith.constant 0 : i32
      %c0_i32_19 = arith.constant 0 : i32
      %12 = tpu.memref_slice %arg7[%c0_i32_18, %c0_i32_19] : memref<16x128xf32, #tpu.memory_space<vmem>> -> memref<1x128xf32, #tpu.memory_space<vmem>>
      %13 = tpu.memref_slice %arg8[%c1_i32_15] : memref<2x!tpu.dma_semaphore, #tpu.memory_space<semaphore_mem>> -> memref<1x!tpu.dma_semaphore, #tpu.memory_space<semaphore_mem>>
      %14 = tpu.memref_squeeze %13 : memref<1x!tpu.dma_semaphore, #tpu.memory_space<semaphore_mem>> -> memref<!tpu.dma_semaphore, #tpu.memory_space<semaphore_mem>>
      tpu.wait_dma2 semaphore(%14 : memref<!tpu.dma_semaphore, #tpu.memory_space<semaphore_mem>>) src(%11 : memref<1x128xf32, #tpu.memory_space<any>>) dst(%12 : memref<1x128xf32, #tpu.memory_space<vmem>>)
    }
    %c0 = arith.constant 0 : index
    %c0_5 = arith.constant 0 : index
    %3 = vector.load %arg6[%c0, %c0_5] : memref<16x128xf32, #tpu.memory_space<vmem>>, vector<16x128xf32>
    %c0_6 = arith.constant 0 : index
    %c0_7 = arith.constant 0 : index
    %4 = vector.load %arg7[%c0_6, %c0_7] : memref<16x128xf32, #tpu.memory_space<vmem>>, vector<16x128xf32>
    %5 = arith.addf %3, %4 : vector<16x128xf32>
    %c0_8 = arith.constant 0 : index
    %c0_9 = arith.constant 0 : index
    %6 = vector.load %arg5[%c0_8, %c0_9] : memref<16x128xf32, #tpu.memory_space<vmem>>, vector<16x128xf32>
    tpu.vector_store %arg5[%c0_8, %c0_9], %5 {strides = array<i32>} : memref<16x128xf32, #tpu.memory_space<vmem>>, vector<16x128xf32>,
    return
  }
  func.func @transform_2(%arg0: i32, %arg1: memref<16xi32, #tpu.memory_space<smem>>, %arg2: memref<16xi32, #tpu.memory_space<smem>>) -> (i32, i32) {
    %c0_i32 = arith.constant 0 : i32
    %c0_i32_0 = arith.constant 0 : i32
    return %arg0, %c0_i32 : i32, i32
  }
}

</mosaic_0001>

<llo_original>
// kernel: tpu_custom_call.1
$region0: #{tpu_custom_call.1}
  #allocation0 [shape = 'u32[]', space=smem, size = 0x4, offset = 0x4, fixed_abs, tag = 'smem constant byte address 0x4 - core index']
  #allocation1 [shape = 'u32[72,128]{1,0:T(1,128)}', space=vmem, size = 0x9000, scoped, tag = 'internal scratch']
  #allocation2 [shape = 'f32[16,128]{1,0:T(8,128)}', space=vmem, size = 0x2000, scoped, tag = 'scratch operand']
  #allocation3 [shape = 'f32[16,128]{1,0:T(8,128)}', space=vmem, size = 0x2000, scoped, tag = 'scratch operand']
  #allocation4 [shape = 's32[2]{0}', space=sflag, size = 0x8, scoped, tag = 'scratch operand']
  #allocation5 [shape = 's32[1]{0}', space=sflag, size = 0x4, scoped, tag = 'scoped memory for tpu_custom_call.1']
  #allocation6 [shape = 'u8[512]{0}', space=smem, size = 0x200, scoped, tag = 'prefetched SMEM operand 0']
  #allocation7 [shape = 'u8[512]{0}', space=smem, size = 0x200, scoped, tag = 'prefetched SMEM operand 1']
  #allocation10 [shape = 's32[]', space=sflag, size = 0x4, offset = 0, fixed_abs, tag = 'sflag constant byte address 0x0 - dummy sync flag']
  #allocation11 [shape = 's32[]', space=sflag, size = 0x4, offset = 0, fixed_abs, tag = 'sflag constant byte address 0x0 - dummy sync flag']
  #allocation12 [shape = 'u32[]', space=smem, size = 0x4, offset = 0x44, fixed_abs, tag = 'smem constant byte address 0x44 - assertion arg 0']
  #allocation13 [shape = 'u32[]', space=smem, size = 0x4, offset = 0x48, fixed_abs, tag = 'smem constant byte address 0x48 - assertion arg 1']
  #allocation14 [shape = 's32[]', space=sflag, size = 0x4, offset = 0, fixed_abs, tag = 'sflag constant byte address 0x0 - dummy sync flag']
  #allocation15 [shape = 's32[]', space=sflag, size = 0x4, offset = 0, fixed_abs, tag = 'sflag constant byte address 0x0 - dummy sync flag']
  %s0 = inlined_call_operand.hbm [shape: s32[16], index: 0, kind: input, shape index: {}]
  %s1 = inlined_call_operand.hbm [shape: s32[16], index: 1, kind: input, shape index: {}]
  %s2 = inlined_call_operand.hbm [shape: f32[128,128], index: 2, kind: input, shape index: {}]
  %s3 = inlined_call_operand.hbm [shape: f32[64,128], index: 3, kind: input, shape index: {}]
  %s4 = inlined_call_operand.hbm [shape: f32[16,128], index: 4, kind: output, shape index: {}]
  %s5 = sld [smem:[#allocation0]]
  $region32: #{tpu_custom_call.1} parent=0
    _
  %s7 = ssub.s32 1, %s5
  %s8 = scalar_select 0, %s7, %s5
  %s10 = sshll.u32 %s0, 4
  %s11 = int_to_ptr.hbm [resolvable:$true] %s10
  %13 = dma.hbm_to_smem %s11, 16, [#allocation6], [#allocation5]
  %s15 = sshll.u32 %s1, 4
  %s16 = int_to_ptr.hbm [resolvable:$true] %s15
  %18 = dma.hbm_to_smem %s16, 16, [#allocation7], [#allocation5]
  %20 = dma.done [#allocation5], 32
  %21 = sfence
  $region1: #{tpu_custom_call.1} parent=0
    #allocation8 [shape = 'u8[8192]{0}', space=vmem, size = 0x2000, scoped, tag = 'output window, operand 0, single buffered']
    #allocation9 [shape = 's32[1]{0}', space=sflag, size = 0x4, scoped, tag = 'scoped memory for tpu_custom_call.1']
    %22 = vsyncpa [#allocation9], 0
    %s23 = smul.u32 0, 16
    loop: start=0, step=1, limit=16
    $region2: #{tpu_custom_call.1} parent=1 // loop_pre_header
      _
    $region3: #{tpu_custom_call.1} parent=1 // loop_header
      %s25 = sphi 0, %s29
      %p26 = scmp.ge.s32.totalorder %s25, 16
    $region4: #{tpu_custom_call.1} parent=1 // loop_header_branch
      %28 = sbr.rel (%p26) target = $region8
    $region5: #{tpu_custom_call.1} parent=1 // loop_body
      %s30 = sadd.s32 %s23, %s25
      %s31 = sld [smem:[#allocation6 + %s30]]
      %s32 = sld [smem:[#allocation7 + %s30]]
      %s33 = scalar_lea.hbm %s2, %s31
      %s34 = scalar_lea.vmem [#allocation2], %s25
      // Predicated region
      $region9: #{tpu_custom_call.1} parent=5 // pred_check
        _
      $region10: #{tpu_custom_call.1} parent=5 // pred_check_branch
        %36 = sbr.rel target = $region12
      $region11: #{tpu_custom_call.1} parent=5 // pred_region
        %37 = sst [smem:[#allocation12]] [#allocation11]
        %38 = sst [smem:[#allocation13]] [#allocation10]
      $region12: #{tpu_custom_call.1} parent=5 // pred_fallthru
        _
      %40 = shalt.err (0)
      %s42 = sshll.u32 %s33, 4
      %s43 = int_to_ptr.hbm [resolvable:$true] %s42
      %s44 = sshll.u32 %s34, 4
      %s45 = int_to_ptr.vmem [resolvable:$true] %s44
      %47 = dma.hbm_to_vmem [thread:$0]  %s43, 16, %s45, [#allocation4]
      %s48 = scalar_lea.hbm %s3, %s32
      %s49 = scalar_lea.vmem [#allocation3], %s25
      %s50 = scalar_lea.sflag [#allocation4], 1
      // Predicated region
      $region13: #{tpu_custom_call.1} parent=5 // pred_check
        _
      $region14: #{tpu_custom_call.1} parent=5 // pred_check_branch
        %52 = sbr.rel target = $region16
      $region15: #{tpu_custom_call.1} parent=5 // pred_region
        %53 = sst [smem:[#allocation12]] [#allocation15]
        %54 = sst [smem:[#allocation13]] [#allocation14]
      $region16: #{tpu_custom_call.1} parent=5 // pred_fallthru
        _
      %56 = shalt.err (0)
      %s58 = sshll.u32 %s48, 4
      %s59 = int_to_ptr.hbm [resolvable:$true] %s58
      %s60 = sshll.u32 %s49, 4
      %s61 = int_to_ptr.vmem [resolvable:$true] %s60
      %63 = dma.hbm_to_vmem [thread:$0]  %s59, 16, %s61, %s50
    $region6: #{tpu_custom_call.1} parent=1 // loop_footer
      %s29 = sadd.s32 1, %s25
    $region7: #{tpu_custom_call.1} parent=1 // loop_footer_branch
      %24 = sbr.rel target = $region3
    $region8: #{tpu_custom_call.1} parent=1 // loop_exit
      _
    loop: start=0, step=1, limit=16
    $region17: #{tpu_custom_call.1} parent=1 // loop_pre_header
      _
    $region18: #{tpu_custom_call.1} parent=1 // loop_header
      %s65 = sphi 0, %s69
      %p66 = scmp.ge.s32.totalorder %s65, 16
    $region19: #{tpu_custom_call.1} parent=1 // loop_header_branch
      %68 = sbr.rel (%p66) target = $region23
    $region20: #{tpu_custom_call.1} parent=1 // loop_body
      %s70 = smul.u32 1, 1
      %s71 = sshll.u32 %s70, 4
      %72 = dma.done [#allocation4], %s71
      %s73 = scalar_lea.sflag [#allocation4], 1
      %s74 = sshll.u32 %s70, 4
      %75 = dma.done %s73, %s74
    $region21: #{tpu_custom_call.1} parent=1 // loop_footer
      %s69 = sadd.s32 1, %s65
    $region22: #{tpu_custom_call.1} parent=1 // loop_footer_branch
      %64 = sbr.rel target = $region18
    $region23: #{tpu_custom_call.1} parent=1 // loop_exit
      _
    %v76 = vld [vmem:[#allocation2] sm:$0xff]
    %v77 = vld [vmem:[#allocation2 + $0x8] sm:$0xff]
    %v78 = vld [vmem:[#allocation3] sm:$0xff]
    %v79 = vld [vmem:[#allocation3 + $0x8] sm:$0xff]
    %v80 = vadd.f32 %v76, %v78
    %v81 = vadd.f32 %v77, %v79
    %82 = vst [vmem:[#allocation8] sm:$0xff] %v80
    %83 = vst [vmem:[#allocation8 + $0x8] sm:$0xff] %v81
    // Predicated region
    $region24: #{tpu_custom_call.1} parent=1 // pred_check
      _
    $region25: #{tpu_custom_call.1} parent=1 // pred_check_branch
      %85 = sbr.rel (0) target = $region27
    $region26: #{tpu_custom_call.1} parent=1 // pred_region
      %87 = vsyncadd [#allocation9], 0
      %s88 = sshll.u32 [#allocation8], 4
      %s89 = int_to_ptr.vmem [resolvable:$true] %s88
      %s90 = sshll.u32 %s4, 4
      %s91 = int_to_ptr.hbm [resolvable:$true] %s90
      %96 = dma.vmem_to_hbm [thread:$0]  %s89, 256, %s91, [#allocation9], 128, 128, 8
    $region27: #{tpu_custom_call.1} parent=1 // pred_fallthru
      _
    // Predicated region
    $region28: #{tpu_custom_call.1} parent=1 // pred_check
      _
    $region29: #{tpu_custom_call.1} parent=1 // pred_check_branch
      %98 = sbr.rel (0) target = $region31
    $region30: #{tpu_custom_call.1} parent=1 // pred_region
      %100 = dma.done [#allocation9], 256
    $region31: #{tpu_custom_call.1} parent=1 // pred_fallthru
      _
    %101 = vsyncpa [#allocation9], 1
  %102 = vsyncmov [#allocation4]
  %s103 = vpop.sfrf %102
  %p104 = scmp.eq.s32.totalorder %s103, 0
  %p105 = pneg %p104
  %107 = shalt.err (%p105)
  %s108 = scalar_lea.sflag [#allocation4], 1
  %109 = vsyncmov %s108
  %s110 = vpop.sfrf %109
  %p111 = scmp.eq.s32.totalorder %s110, 0
  %p112 = pneg %p111
  %114 = shalt.err (%p112)

</llo_original>
